<compile_context>
chip_gen: v5e
topology: v5e:2x2
jax: 0.10.0
libtpu: 0.0.40
codegen_flags: <defaults>
</compile_context>

<pallas_src>
import functools

import numpy as np
import jax
import jax.numpy as jnp
from jax.experimental import pallas as pl
from jax.experimental.pallas import tpu as pltpu


def _round_up(a, b):
    return (a + b - 1) // b * b


def _patch_proj_kernel(xp_ref, w_ref, b_ref, o_ref):
    # xp_ref: (tm, CK) compute dtype | w_ref: (CK, tn) compute dtype
    # b_ref : (1, tn) f32            | o_ref: (tm, tn) out dtype
    acc = jnp.dot(xp_ref[...], w_ref[...], preferred_element_type=jnp.float32)
    o_ref[...] = (acc + b_ref[...]).astype(o_ref.dtype)


def _derive_tiles(M, E, CK, compute_bytes, out_bytes,
                  tm_target=1024, tn_target=1024, vmem_budget=12 * 1024 * 1024):
    """Pick (tm, tn) under a conservative double-buffered VMEM budget."""
    LANE, SUB = 128, 8

    # Lane-dim tile: 128-multiples when E allows, else the full extent
    # (a full-extent last dim satisfies the (8,128) BlockSpec rule unpadded).
    if E % LANE == 0:
        tn = min(E, tn_target)
    else:
        tn = E

    ck_lane = _round_up(CK, LANE)                   # patches lane padding (in VMEM only)
    sub_granule = max(SUB, 32 // compute_bytes)     # 8 f32 / 16 bf16 sublanes
    ck_sub = _round_up(CK, sub_granule)             # weight sublane padding (in VMEM only)

    def footprint(tm, tn):
        tn_pad = _round_up(tn, LANE)
        return 2 * (tm * ck_lane * compute_bytes        # patches, double-buffered
                    + ck_sub * tn_pad * compute_bytes   # weight
                    + SUB * tn_pad * 4                  # bias
                    + tm * tn_pad * out_bytes)          # output

    # Balance M tiles so awkward M (e.g. 520) doesn't waste ~2x rows of work.
    num_m = max(1, pl.cdiv(M, tm_target))
    tm = _round_up(pl.cdiv(M, num_m), SUB)
    while footprint(tm, tn) > vmem_budget and tm > 64:
        num_m += 1
        tm = _round_up(pl.cdiv(M, num_m), SUB)
    while footprint(tm, tn) > vmem_budget and E % LANE == 0 and tn > LANE:
        tn = max(LANE, (tn // 2) // LANE * LANE)

    # v7x shards "parallel" grid axes over 2 TensorCores: avoid a 1x1 grid for
    # problems big enough to split.
    if pl.cdiv(M, tm) == 1 and pl.cdiv(E, tn) == 1 and M >= 16:
        tm = _round_up(pl.cdiv(M, 2), SUB)
    return tm, tn


def patch_embed_forward(x, weight, bias, patch_size, *, compute_dtype=jnp.bfloat16,
                        out_dtype=None):
    """x: (B, C, L); weight: (E, C, K); bias: (E,). Returns (B, P, E)."""
    B, C, L = x.shape
    E, C_w, K = weight.shape
    assert C_w == C and K == patch_size
    stride = patch_size // 2
    assert stride >= 1
    # Conv1d VALID output length; trailing samples with (L-K) % stride != 0 are
    # dropped, matching both nn.Conv1d and the module's
    # num_patches = int((seq_len - patch_size)/stride + 1).
    P = (L - patch_size) // stride + 1
    assert P >= 1

    M, CK = B * P, C * K
    out_dtype = x.dtype if out_dtype is None else out_dtype

    # --- im2col glue (strided overlapping windows), plain JAX ---
    # TODO(synk): for stride == K//2 the 2x window duplication could be removed
    # by splitting W into half-kernel blocks and contracting non-overlapping
    # half-windows (out[p] = Xh[p] @ W_lo + Xh[p+1] @ W_hi); not worth the
    # BlockSpec complexity while CK << E (the (M, E) output dominates HBM bytes).
    starts = jnp.arange(P) * stride                    # (P,)
    idx = starts[:, None] + jnp.arange(K)[None, :]     # (P, K)
    patches = x[:, :, idx]                             # (B, C, P, K)
    patches = jnp.transpose(patches, (0, 2, 1, 3)).reshape(M, CK)
    patches = patches.astype(compute_dtype)            # no CK padding

    w2d = weight.reshape(E, CK).T.astype(compute_dtype)        # (CK, E), (c,k)-major rows
    b2d = bias.astype(jnp.float32).reshape(1, E)

    cbytes = np.dtype(compute_dtype).itemsize
    obytes = np.dtype(jnp.dtype(out_dtype)).itemsize
    tm, tn = _derive_tiles(M, E, CK, cbytes, obytes)
    grid = (pl.cdiv(E, tn), pl.cdiv(M, tm))            # E tiles outer, M tiles inner

    cost = pl.CostEstimate(
        flops=2 * M * CK * E,
        transcendentals=0,
        bytes_accessed=(M * CK * cbytes + CK * E * cbytes + E * 4 + M * E * obytes),
    )

    # Grid order (j, i): weight/bias block index is constant across the inner M
    # sweep -> fetched once per E tile; patches stream; each output tile is
    # written exactly once.  Ragged boundary tiles are handled by Pallas, so
    # there is no physical padding and no post-kernel slice.
    out = pl.pallas_call(
        _patch_proj_kernel,
        out_shape=jax.ShapeDtypeStruct((M, E), out_dtype),
        grid=grid,
        in_specs=[
            pl.BlockSpec((tm, CK), lambda j, i: (i, 0)),   # patches: M-tiled, full CK
            pl.BlockSpec((CK, tn), lambda j, i: (0, j)),   # weight: resident across M
            pl.BlockSpec((1, tn), lambda j, i: (0, j)),    # bias:   resident across M
        ],
        out_specs=pl.BlockSpec((tm, tn), lambda j, i: (i, j)),
        compiler_params=pltpu.CompilerParams(
            dimension_semantics=("parallel", "parallel"),  # no reduction axis
        ),
        cost_estimate=cost,
    )(patches, w2d, b2d)

    # TODO(synk): if profiling shows exposed DMA on the patches stream, add
    # pipeline_mode=pl.Buffered(3) to the patches BlockSpec.
    return out.reshape(B, P, E)


if __name__ == "__main__":
    # Small shapes consistent with the module:
    #   seq_len=16, patch_size=8 -> stride=4, num_patches=(16-8)//4+1 = 3
    #   in_chans=4, embed_dim=32, batch=2
    B, C, L = 2, 4, 16
    patch_size = 8
    E = 32
    stride = patch_size // 2
    P = (L - patch_size) // stride + 1

    key = jax.random.PRNGKey(0)
    kx, kw, kb = jax.random.split(key, 3)

    x = jax.random.normal(kx, (B, C, L), dtype=jnp.float32)
    # Deterministic synthetic parameters (Conv1d weight/bias shapes).
    weight = jax.random.normal(kw, (E, C, patch_size), dtype=jnp.float32) * 0.05
    bias = jax.random.normal(kb, (E,), dtype=jnp.float32) * 0.05

    fwd = jax.jit(functools.partial(patch_embed_forward, patch_size=patch_size))
    out = jax.block_until_ready(fwd(x, weight, bias))

    # Reference: plain-JAX Conv1d (f32).
    ref = jax.lax.conv_general_dilated(
        x, weight, window_strides=(stride,), padding="VALID",
        dimension_numbers=("NCH", "OIH", "NCH"),
    ) + bias[None, :, None]
    ref = jnp.transpose(ref, (0, 2, 1))  # (B, P, E)

    assert out.shape == (B, P, E), out.shape
    assert out.dtype == x.dtype, out.dtype
    # bf16 MXU operands (f32 accumulation) -> loosened tolerance vs f32 reference.
    assert jnp.allclose(out, ref, atol=3e-2, rtol=3e-2), float(jnp.max(jnp.abs(out - ref)))

    print("KERNEL_OK")
</pallas_src>

<mosaic_0001>
module attributes {stable_mosaic.version = 11 : i64} {
  func.func @_patch_proj_kernel(%arg0: i32, %arg1: i32, %arg2: memref<8x32xbf16, #tpu.memory_space<vmem>>, %arg3: memref<32x32xbf16, #tpu.memory_space<vmem>>, %arg4: memref<1x32xf32, #tpu.memory_space<vmem>>, %arg5: memref<8x32xf32, #tpu.memory_space<vmem>>) attributes {dimension_semantics = [#tpu.dimension_semantics<parallel>, #tpu.dimension_semantics<parallel>], iteration_bounds = array<i64: 1, 1>, scalar_prefetch = 0 : i64, scratch_operands = 0 : i64, tpu.core_type = #tpu.core_type<tc>, window_params = [{transform_indices = @transform_0, window_bounds = array<i64: 8, 32>}, {transform_indices = @transform_1, window_bounds = array<i64: 32, 32>}, {transform_indices = @transform_2, window_bounds = array<i64: 1, 32>}, {transform_indices = @transform_3, window_bounds = array<i64: 8, 32>}]} {
    %c0 = arith.constant 0 : index
    %c0_0 = arith.constant 0 : index
    %0 = vector.load %arg2[%c0, %c0_0] : memref<8x32xbf16, #tpu.memory_space<vmem>>, vector<8x32xbf16>
    %c0_1 = arith.constant 0 : index
    %c0_2 = arith.constant 0 : index
    %1 = vector.load %arg3[%c0_1, %c0_2] : memref<32x32xbf16, #tpu.memory_space<vmem>>, vector<32x32xbf16>
    %cst = arith.constant dense<0.000000e+00> : vector<8x32xf32>
    %2 = tpu.matmul %0, %1, %cst {dimension_numbers = #tpu.dot_dimension_numbers<[1], [0], [0], [1], [0, 0, 1, 1], [], []>} : vector<8x32xbf16>, vector<32x32xbf16>, vector<8x32xf32> -> vector<8x32xf32>
    %c0_3 = arith.constant 0 : index
    %c0_4 = arith.constant 0 : index
    %3 = vector.load %arg4[%c0_3, %c0_4] : memref<1x32xf32, #tpu.memory_space<vmem>>, vector<1x32xf32>
    %4 = vector.broadcast %3 : vector<1x32xf32> to vector<8x32xf32>
    %5 = arith.addf %2, %4 : vector<8x32xf32>
    %c0_5 = arith.constant 0 : index
    %c0_6 = arith.constant 0 : index
    %6 = vector.load %arg5[%c0_5, %c0_6] : memref<8x32xf32, #tpu.memory_space<vmem>>, vector<8x32xf32>
    tpu.vector_store %arg5[%c0_5, %c0_6], %5 {strides = array<i32>} : memref<8x32xf32, #tpu.memory_space<vmem>>, vector<8x32xf32>,
    return
  }
  func.func @transform_0(%arg0: i32, %arg1: i32) -> (i32, i32) {
    %c0_i32 = arith.constant 0 : i32
    %c0_i32_0 = arith.constant 0 : i32
    return %arg1, %c0_i32 : i32, i32
  }
  func.func @transform_1(%arg0: i32, %arg1: i32) -> (i32, i32) {
    %c0_i32 = arith.constant 0 : i32
    %c0_i32_0 = arith.constant 0 : i32
    return %c0_i32, %arg0 : i32, i32
  }
  func.func @transform_2(%arg0: i32, %arg1: i32) -> (i32, i32) {
    %c0_i32 = arith.constant 0 : i32
    %c0_i32_0 = arith.constant 0 : i32
    return %c0_i32, %arg0 : i32, i32
  }
  func.func @transform_3(%arg0: i32, %arg1: i32) -> (i32, i32) {
    %c0_i32 = arith.constant 0 : i32
    return %arg1, %arg0 : i32, i32
  }
}

</mosaic_0001>

<llo_original>
// kernel: patch_embed_forward.1
$region0: #{patch_embed_forward.1}
  #allocation0 [shape = 'u32[]', space=smem, size = 0x4, offset = 0x4, fixed_abs, tag = 'smem constant byte address 0x4 - core index']
  #allocation1 [shape = 'u32[72,128]{1,0:T(1,128)}', space=vmem, size = 0x9000, scoped, tag = 'internal scratch']
  %s0 = inlined_call_operand.vmem [shape: bf16[6,32], index: 0, kind: input, shape index: {}]
  %s1 = inlined_call_operand.vmem [shape: bf16[32,32], index: 1, kind: input, shape index: {}]
  %s2 = inlined_call_operand.vmem [shape: f32[1,32], index: 2, kind: input, shape index: {}]
  %s3 = inlined_call_operand.vmem [shape: f32[6,32], index: 3, kind: output, shape index: {}]
  %s4 = sld [smem:[#allocation0]]
  $region22: #{patch_embed_forward.1} parent=0
    _
  %s6 = ssub.s32 1, %s4
  %s7 = scalar_select 0, %s6, %s4
  // Predicated region
  $region2: #{patch_embed_forward.1} parent=0 // pred_check
    _
  $region3: #{patch_embed_forward.1} parent=0 // pred_check_branch
    %9 = sbr.rel (0) target = $region5
  $region4: #{patch_embed_forward.1} parent=0 // pred_region
    _
  $region5: #{patch_embed_forward.1} parent=0 // pred_fallthru
    _
  // Predicated region
  $region6: #{patch_embed_forward.1} parent=0 // pred_check
    _
  $region7: #{patch_embed_forward.1} parent=0 // pred_check_branch
    %11 = sbr.rel (0) target = $region9
  $region8: #{patch_embed_forward.1} parent=0 // pred_region
    _
  $region9: #{patch_embed_forward.1} parent=0 // pred_fallthru
    _
  // Predicated region
  $region10: #{patch_embed_forward.1} parent=0 // pred_check
    _
  $region11: #{patch_embed_forward.1} parent=0 // pred_check_branch
    %13 = sbr.rel (0) target = $region13
  $region12: #{patch_embed_forward.1} parent=0 // pred_region
    _
  $region13: #{patch_embed_forward.1} parent=0 // pred_fallthru
    _
  %v15 = vld [vmem:[%s0] sm:$0xf]
  %v16 = vld [vmem:[%s1] sm:$0xf]
  %v17 = vld [vmem:[%s1 + $0x4] sm:$0xf]
  %v18 = vld [vmem:[%s1 + $0x8] sm:$0xf]
  %v19 = vld [vmem:[%s1 + $0xc] sm:$0xf]
  %v20 = vld [vmem:[%s2] sm:$0x1]
  %v22 = vperm.slane %v20, 0
  %v28 = vunpack.c.l.b16 %v16
  %v29 = vunpack.c.l.b16 %v17
  %v30 = vunpack.c.l.b16 %v18
  %v31 = vunpack.c.l.b16 %v19
  %v32 = vpack.c.b16 %v29, %v28
  %v33 = vpack.c.b16 %v31, %v30
  %vm36 = vcmask 261120
  %v38 = vsel %vm36, %v15, 0
  %40 = vmatpush.bf16.msra.mxu0 0
  %41 = vmatpush.bf16.msra.mxu0 0
  %42 = vmatpush.bf16.msra.mxu0 0
  %43 = vmatpush.bf16.msra.mxu0 0
  %44 = vmatpush.bf16.msra.mxu0 0
  %45 = vmatpush.bf16.msra.mxu0 0
  %46 = vmatpush.bf16.msra.mxu0 %v33
  %47 = vmatpush.bf16.msra.mxu0 %v32
  %48 = vmatmul.bf16.gmra.mxu0 %v38
  %v49 = vpop.f32.mrf.mxu0
  %v50 = vadd.f32 %v22, %v49
  %v51 = vpop.f32.mrf.mxu0
  %52 = vdwg.mxu0
  %53 = vst.msk [vmem:[%s3] sm:$0xff] %vm36, %v50
  // Predicated region
  $region14: #{patch_embed_forward.1} parent=0 // pred_check
    _
  $region15: #{patch_embed_forward.1} parent=0 // pred_check_branch
    %55 = sbr.rel (0) target = $region17
  $region16: #{patch_embed_forward.1} parent=0 // pred_region
    _
  $region17: #{patch_embed_forward.1} parent=0 // pred_fallthru
    _
  // Predicated region
  $region18: #{patch_embed_forward.1} parent=0 // pred_check
    _
  $region19: #{patch_embed_forward.1} parent=0 // pred_check_branch
    %57 = sbr.rel (0) target = $region21
  $region20: #{patch_embed_forward.1} parent=0 // pred_region
    _
  $region21: #{patch_embed_forward.1} parent=0 // pred_fallthru
    _

</llo_original>
